<compile_context>
chip_gen: v7x
topology: tpu7x:2x2x1
jax: 0.10.0
libtpu: 0.0.40
codegen_flags: <defaults>
</compile_context>

<pallas_src>
import functools

import jax
import jax.numpy as jnp
from jax import lax
from jax.experimental import pallas as pl
from jax.experimental.pallas import tpu as pltpu


def _shift_cols(v, offset):
    """out[:, i] = v[:, i + offset] if 0 <= i + offset < HW else 0 (static offset)."""
    if offset == 0:
        return v
    c, hw = v.shape
    fill = jnp.zeros((c, abs(offset)), v.dtype)
    if offset > 0:
        return jnp.concatenate([v[:, offset:], fill], axis=1)
    return jnp.concatenate([fill, v[:, :hw + offset]], axis=1)


def _rdb_kernel(x_ref, ml_ref, mr_ref, ws1_ref, ws2_ref, ws3_ref,
                b1_ref, b2_ref, b3_ref, o_ref, *, W, mxu_dtype):
    # x_ref   : (Cin, HW)  one batch element, NCHW-flat (lane-dense)
    # ml/mr   : (1, HW)    f32 {0,1} masks, zero where a +/-1 x-shift crosses a row edge
    # ws*_ref : stage-stacked im2col weight matrices (see wrapper), mxu_dtype
    # b*_ref  : (Cout, 1)  f32 biases
    # o_ref   : (Cin, HW)  lane-dense output block
    g = b1_ref.shape[0]

    x = x_ref[...].astype(jnp.float32)                       # (Cin, HW)
    ml = ml_ref[...]
    mr = mr_ref[...]

    def tap_stack(v):
        # v: (C, HW) f32 -> (9*C, HW) mxu_dtype.  Row block p = dy*3+dx holds v
        # shifted so output pixel (y, x) sees input pixel (y+dy-1, x+dx-1),
        # with the 3x3 "same" zero padding expressed as zero-fill + column masks.
        pieces = []
        for dy in range(3):
            for dx in range(3):
                s = _shift_cols(v, (dy - 1) * W + (dx - 1))
                if dx == 0:
                    s = s * ml                                # drop x == 0 columns
                elif dx == 2:
                    s = s * mr                                # drop x == W-1 columns
                pieces.append(s)
        return jnp.concatenate(pieces, axis=0).astype(mxu_dtype)

    # Stage 1: everything that reads x (conv1, conv2's x part, conv3's x part).
    a1 = jnp.dot(ws1_ref[...], tap_stack(x), preferred_element_type=jnp.float32)
    c1 = jnp.maximum(a1[:g] + b1_ref[...], 0.0)               # (G, HW)

    # Stage 2: everything that reads c1 (conv2's c1 part, conv3's c1 part).
    a2 = jnp.dot(ws2_ref[...], tap_stack(c1), preferred_element_type=jnp.float32)
    c2 = jnp.maximum(a1[g:2 * g] + a2[:g] + b2_ref[...], 0.0)  # (G, HW)

    # Stage 3: conv3's c2 part, then bias + residual.  Output stays (Cin, HW).
    a3 = jnp.dot(ws3_ref[...], tap_stack(c2), preferred_element_type=jnp.float32)
    out = a1[2 * g:] + a2[g:] + a3 + b3_ref[...] + x
    o_ref[...] = out.astype(o_ref.dtype)


def _taps_flat(w):
    """(O, I, 3, 3) OIHW conv weight -> (O, 9*I); column = (dy*3+dx)*I + i."""
    o, i = w.shape[0], w.shape[1]
    return jnp.transpose(w, (0, 2, 3, 1)).reshape(o, 9 * i)


@functools.partial(jax.jit, static_argnames=("mxu_dtype",))
def rdb_forward(x_nchw, params, mxu_dtype=jnp.bfloat16):
    """RDB forward.  Input/output are NCHW (PyTorch convention)."""
    N, Cin, H, W = x_nchw.shape
    G = params["w1"].shape[0]
    HW = H * W
    dtype = x_nchw.dtype

    w1, w2, w3 = params["w1"], params["w2"], params["w3"]
    # Stage-stacked weight matrices (tiny, one-time per call under jit).
    ws1 = jnp.concatenate(
        [_taps_flat(w1), _taps_flat(w2[:, :Cin]), _taps_flat(w3[:, :Cin])],
        axis=0).astype(mxu_dtype)                              # (2G+Cin, 9*Cin)
    ws2 = jnp.concatenate(
        [_taps_flat(w2[:, Cin:]), _taps_flat(w3[:, Cin:Cin + G])],
        axis=0).astype(mxu_dtype)                              # (G+Cin, 9*G)
    ws3 = _taps_flat(w3[:, Cin + G:]).astype(mxu_dtype)        # (Cin, 9*G)
    b1 = params["b1"].reshape(G, 1).astype(jnp.float32)
    b2 = params["b2"].reshape(G, 1).astype(jnp.float32)
    b3 = params["b3"].reshape(Cin, 1).astype(jnp.float32)

    # Column masks for the +/-1 horizontal shifts (zero where the shift would
    # wrap across a row edge); y-edge padding is handled by the shift zero-fill.
    col = jnp.arange(HW, dtype=jnp.int32) % W
    mask_l = (col != 0).astype(jnp.float32).reshape(1, HW)
    mask_r = (col != W - 1).astype(jnp.float32).reshape(1, HW)

    x_flat = x_nchw.reshape(N, Cin, HW)        # free reshape; the only x stream

    kernel = functools.partial(_rdb_kernel, W=W, mxu_dtype=mxu_dtype)

    def whole(shape):
        return pl.BlockSpec(shape, lambda n: (0, 0))

    out_flat = pl.pallas_call(
        kernel,
        out_shape=jax.ShapeDtypeStruct((N, Cin, HW), dtype),
        grid_spec=pltpu.PrefetchScalarGridSpec(
            num_scalar_prefetch=0,
            grid=(N,),
            in_specs=[
                pl.BlockSpec((None, Cin, HW), lambda n: (n, 0, 0)),
                whole((1, HW)),
                whole((1, HW)),
                whole(ws1.shape),
                whole(ws2.shape),
                whole(ws3.shape),
                whole((G, 1)),
                whole((G, 1)),
                whole((Cin, 1)),
            ],
            out_specs=pl.BlockSpec((None, Cin, HW), lambda n: (n, 0, 0)),
        ),
        compiler_params=pltpu.CompilerParams(
            dimension_semantics=("parallel",)),
    )(x_flat, mask_l, mask_r, ws1, ws2, ws3, b1, b2, b3)

    return out_flat.reshape(N, Cin, H, W)


def init_rdb_params(key, in_channels, growth_rate):
    """Deterministic parameter init, OIHW weights (PyTorch Conv2d layout)."""
    ks = jax.random.split(key, 6)

    def _conv_params(kw, kb, cin, cout):
        fan_in = cin * 9
        bound = 1.0 / jnp.sqrt(fan_in)
        w = jax.random.uniform(kw, (cout, cin, 3, 3), jnp.float32, -bound, bound)
        b = jax.random.uniform(kb, (cout,), jnp.float32, -bound, bound)
        return w, b

    w1, b1 = _conv_params(ks[0], ks[1], in_channels, growth_rate)
    w2, b2 = _conv_params(ks[2], ks[3], in_channels + growth_rate, growth_rate)
    w3, b3 = _conv_params(ks[4], ks[5], in_channels + 2 * growth_rate, in_channels)
    return dict(w1=w1, b1=b1, w2=w2, b2=b2, w3=w3, b3=b3)


def _reference_rdb(x_nchw, params):
    """Pure-JAX reference (f32 lax conv) for the correctness check."""
    dn = ("NCHW", "OIHW", "NCHW")

    def conv(x, w, b):
        y = lax.conv_general_dilated(x, w, (1, 1), ((1, 1), (1, 1)),
                                     dimension_numbers=dn,
                                     precision=lax.Precision.HIGHEST)
        return y + b.reshape(1, -1, 1, 1)

    x = x_nchw
    c1 = jax.nn.relu(conv(x, params["w1"], params["b1"]))
    c2 = jax.nn.relu(conv(jnp.concatenate([x, c1], 1), params["w2"], params["b2"]))
    c3 = conv(jnp.concatenate([x, c1, c2], 1), params["w3"], params["b3"])
    return c3 + x


if __name__ == "__main__":
    in_channels = 4
    growth_rate = 8
    N, H, W = 2, 16, 16

    key = jax.random.PRNGKey(0)
    kx, kp = jax.random.split(key)
    x = jax.random.normal(kx, (N, in_channels, H, W), jnp.float32)
    params = init_rdb_params(kp, in_channels, growth_rate)

    ref = jax.block_until_ready(_reference_rdb(x, params))

    # f32-MXU path: tight check of the tap/shift/weight plumbing.
    out_f32 = jax.block_until_ready(rdb_forward(x, params, mxu_dtype=jnp.float32))
    assert out_f32.shape == (N, in_channels, H, W)
    assert jnp.allclose(out_f32, ref, atol=1e-4, rtol=1e-4)

    # bf16-MXU path (default, fast): f32 accumulation, looser tolerance from
    # bf16 operand rounding.
    out_bf16 = jax.block_until_ready(rdb_forward(x, params))
    assert out_bf16.shape == (N, in_channels, H, W)
    assert jnp.allclose(out_bf16, ref, atol=3e-2, rtol=3e-2)

    print("KERNEL_OK")
</pallas_src>

<mosaic_0001>
module attributes {stable_mosaic.version = 11 : i64} {
  func.func @_rdb_kernel(%arg0: i32, %arg1: memref<1x4x256xf32, #tpu.memory_space<vmem>>, %arg2: memref<1x256xf32, #tpu.memory_space<vmem>>, %arg3: memref<1x256xf32, #tpu.memory_space<vmem>>, %arg4: memref<20x36xf32, #tpu.memory_space<vmem>>, %arg5: memref<12x72xf32, #tpu.memory_space<vmem>>, %arg6: memref<4x72xf32, #tpu.memory_space<vmem>>, %arg7: memref<8x1xf32, #tpu.memory_space<vmem>>, %arg8: memref<8x1xf32, #tpu.memory_space<vmem>>, %arg9: memref<4x1xf32, #tpu.memory_space<vmem>>, %arg10: memref<1x4x256xf32, #tpu.memory_space<vmem>>) attributes {dimension_semantics = [#tpu.dimension_semantics<parallel>], iteration_bounds = array<i64: 2>, scalar_prefetch = 0 : i64, scratch_operands = 0 : i64, tpu.core_type = #tpu.core_type<tc>, window_params = [{transform_indices = @transform_0, window_bounds = array<i64: 1, 4, 256>}, {pipeline_mode = #tpu.pipeline_mode<synchronous>, transform_indices = @transform_1, window_bounds = array<i64: 1, 256>}, {pipeline_mode = #tpu.pipeline_mode<synchronous>, transform_indices = @transform_2, window_bounds = array<i64: 1, 256>}, {pipeline_mode = #tpu.pipeline_mode<synchronous>, transform_indices = @transform_3, window_bounds = array<i64: 20, 36>}, {pipeline_mode = #tpu.pipeline_mode<synchronous>, transform_indices = @transform_4, window_bounds = array<i64: 12, 72>}, {pipeline_mode = #tpu.pipeline_mode<synchronous>, transform_indices = @transform_5, window_bounds = array<i64: 4, 72>}, {pipeline_mode = #tpu.pipeline_mode<synchronous>, transform_indices = @transform_6, window_bounds = array<i64: 8, 1>}, {pipeline_mode = #tpu.pipeline_mode<synchronous>, transform_indices = @transform_7, window_bounds = array<i64: 8, 1>}, {pipeline_mode = #tpu.pipeline_mode<synchronous>, transform_indices = @transform_8, window_bounds = array<i64: 4, 1>}, {transform_indices = @transform_9, window_bounds = array<i64: 1, 4, 256>}]} {
    %c0 = arith.constant 0 : index
    %c0_0 = arith.constant 0 : index
    %c0_1 = arith.constant 0 : index
    %0 = vector.load %arg1[%c0, %c0_0, %c0_1] : memref<1x4x256xf32, #tpu.memory_space<vmem>>, vector<1x4x256xf32>
    %1 = vector.shape_cast %0 : vector<1x4x256xf32> to vector<4x256xf32>
    %c0_2 = arith.constant 0 : index
    %c0_3 = arith.constant 0 : index
    %2 = vector.load %arg2[%c0_2, %c0_3] : memref<1x256xf32, #tpu.memory_space<vmem>>, vector<1x256xf32>
    %c0_4 = arith.constant 0 : index
    %c0_5 = arith.constant 0 : index
    %3 = vector.load %arg3[%c0_4, %c0_5] : memref<1x256xf32, #tpu.memory_space<vmem>>, vector<1x256xf32>
    %c0_6 = arith.constant 0 : index
    %c0_7 = arith.constant 0 : index
    %4 = vector.load %arg4[%c0_6, %c0_7] : memref<20x36xf32, #tpu.memory_space<vmem>>, vector<20x36xf32>
    %cst = arith.constant 0.000000e+00 : f32
    %5 = vector.broadcast %cst : f32 to vector<4x17xf32>
    %6 = vector.extract_strided_slice %1 {offsets = [0, 0], sizes = [4, 239], strides = [1, 1]} : vector<4x256xf32> to vector<4x239xf32>
    %7 = tpu.concatenate %5, %6 in 1 : vector<4x17xf32>, vector<4x239xf32> -> vector<4x256xf32>
    %8 = vector.broadcast %2 : vector<1x256xf32> to vector<4x256xf32>
    %9 = arith.mulf %7, %8 : vector<4x256xf32>
    %cst_8 = arith.constant 0.000000e+00 : f32
    %10 = vector.broadcast %cst_8 : f32 to vector<4x16xf32>
    %11 = vector.extract_strided_slice %1 {offsets = [0, 0], sizes = [4, 240], strides = [1, 1]} : vector<4x256xf32> to vector<4x240xf32>
    %12 = tpu.concatenate %10, %11 in 1 : vector<4x16xf32>, vector<4x240xf32> -> vector<4x256xf32>
    %cst_9 = arith.constant 0.000000e+00 : f32
    %13 = vector.broadcast %cst_9 : f32 to vector<4x15xf32>
    %14 = vector.extract_strided_slice %1 {offsets = [0, 0], sizes = [4, 241], strides = [1, 1]} : vector<4x256xf32> to vector<4x241xf32>
    %15 = tpu.concatenate %13, %14 in 1 : vector<4x15xf32>, vector<4x241xf32> -> vector<4x256xf32>
    %16 = vector.broadcast %3 : vector<1x256xf32> to vector<4x256xf32>
    %17 = arith.mulf %15, %16 : vector<4x256xf32>
    %cst_10 = arith.constant 0.000000e+00 : f32
    %18 = vector.broadcast %cst_10 : f32 to vector<4x1xf32>
    %19 = vector.extract_strided_slice %1 {offsets = [0, 0], sizes = [4, 255], strides = [1, 1]} : vector<4x256xf32> to vector<4x255xf32>
    %20 = tpu.concatenate %18, %19 in 1 : vector<4x1xf32>, vector<4x255xf32> -> vector<4x256xf32>
    %21 = vector.broadcast %2 : vector<1x256xf32> to vector<4x256xf32>
    %22 = arith.mulf %20, %21 : vector<4x256xf32>
    %cst_11 = arith.constant 0.000000e+00 : f32
    %23 = vector.broadcast %cst_11 : f32 to vector<4x1xf32>
    %24 = vector.extract_strided_slice %1 {offsets = [0, 1], sizes = [4, 255], strides = [1, 1]} : vector<4x256xf32> to vector<4x255xf32>
    %25 = tpu.concatenate %24, %23 in 1 : vector<4x255xf32>, vector<4x1xf32> -> vector<4x256xf32>
    %26 = vector.broadcast %3 : vector<1x256xf32> to vector<4x256xf32>
    %27 = arith.mulf %25, %26 : vector<4x256xf32>
    %cst_12 = arith.constant 0.000000e+00 : f32
    %28 = vector.broadcast %cst_12 : f32 to vector<4x15xf32>
    %29 = vector.extract_strided_slice %1 {offsets = [0, 15], sizes = [4, 241], strides = [1, 1]} : vector<4x256xf32> to vector<4x241xf32>
    %30 = tpu.concatenate %29, %28 in 1 : vector<4x241xf32>, vector<4x15xf32> -> vector<4x256xf32>
    %31 = vector.broadcast %2 : vector<1x256xf32> to vector<4x256xf32>
    %32 = arith.mulf %30, %31 : vector<4x256xf32>
    %cst_13 = arith.constant 0.000000e+00 : f32
    %33 = vector.broadcast %cst_13 : f32 to vector<4x16xf32>
    %34 = vector.extract_strided_slice %1 {offsets = [0, 16], sizes = [4, 240], strides = [1, 1]} : vector<4x256xf32> to vector<4x240xf32>
    %35 = tpu.concatenate %34, %33 in 1 : vector<4x240xf32>, vector<4x16xf32> -> vector<4x256xf32>
    %cst_14 = arith.constant 0.000000e+00 : f32
    %36 = vector.broadcast %cst_14 : f32 to vector<4x17xf32>
    %37 = vector.extract_strided_slice %1 {offsets = [0, 17], sizes = [4, 239], strides = [1, 1]} : vector<4x256xf32> to vector<4x239xf32>
    %38 = tpu.concatenate %37, %36 in 1 : vector<4x239xf32>, vector<4x17xf32> -> vector<4x256xf32>
    %39 = vector.broadcast %3 : vector<1x256xf32> to vector<4x256xf32>
    %40 = arith.mulf %38, %39 : vector<4x256xf32>
    %41 = tpu.concatenate %9, %12, %17, %22, %1, %27, %32, %35, %40 in 0 : vector<4x256xf32>, vector<4x256xf32>, vector<4x256xf32>, vector<4x256xf32>, vector<4x256xf32>, vector<4x256xf32>, vector<4x256xf32>, vector<4x256xf32>, vector<4x256xf32> -> vector<36x256xf32>
    %cst_15 = arith.constant dense<0.000000e+00> : vector<20x256xf32>
    %42 = tpu.matmul %4, %41, %cst_15 {dimension_numbers = #tpu.dot_dimension_numbers<[1], [0], [0], [1], [0, 0, 1, 1], [], []>} : vector<20x36xf32>, vector<36x256xf32>, vector<20x256xf32> -> vector<20x256xf32>
    %43 = vector.extract_strided_slice %42 {offsets = [0, 0], sizes = [8, 256], strides = [1, 1]} : vector<20x256xf32> to vector<8x256xf32>
    %c0_16 = arith.constant 0 : index
    %c0_17 = arith.constant 0 : index
    %44 = vector.load %arg7[%c0_16, %c0_17] : memref<8x1xf32, #tpu.memory_space<vmem>>, vector<8x1xf32>
    %45 = vector.broadcast %44 : vector<8x1xf32> to vector<8x256xf32>
    %46 = arith.addf %43, %45 : vector<8x256xf32>
    %cst_18 = arith.constant 0.000000e+00 : f32
    %47 = vector.broadcast %cst_18 : f32 to vector<8x256xf32>
    %48 = arith.maximumf %46, %47 : vector<8x256xf32>
    %c0_19 = arith.constant 0 : index
    %c0_20 = arith.constant 0 : index
    %49 = vector.load %arg5[%c0_19, %c0_20] : memref<12x72xf32, #tpu.memory_space<vmem>>, vector<12x72xf32>
    %cst_21 = arith.constant 0.000000e+00 : f32
    %50 = vector.broadcast %cst_21 : f32 to vector<8x17xf32>
    %51 = vector.extract_strided_slice %48 {offsets = [0, 0], sizes = [8, 239], strides = [1, 1]} : vector<8x256xf32> to vector<8x239xf32>
    %52 = tpu.concatenate %50, %51 in 1 : vector<8x17xf32>, vector<8x239xf32> -> vector<8x256xf32>
    %53 = vector.broadcast %2 : vector<1x256xf32> to vector<8x256xf32>
    %54 = arith.mulf %52, %53 : vector<8x256xf32>
    %cst_22 = arith.constant 0.000000e+00 : f32
    %55 = vector.broadcast %cst_22 : f32 to vector<8x16xf32>
    %56 = vector.extract_strided_slice %48 {offsets = [0, 0], sizes = [8, 240], strides = [1, 1]} : vector<8x256xf32> to vector<8x240xf32>
    %57 = tpu.concatenate %55, %56 in 1 : vector<8x16xf32>, vector<8x240xf32> -> vector<8x256xf32>
    %cst_23 = arith.constant 0.000000e+00 : f32
    %58 = vector.broadcast %cst_23 : f32 to vector<8x15xf32>
    %59 = vector.extract_strided_slice %48 {offsets = [0, 0], sizes = [8, 241], strides = [1, 1]} : vector<8x256xf32> to vector<8x241xf32>
    %60 = tpu.concatenate %58, %59 in 1 : vector<8x15xf32>, vector<8x241xf32> -> vector<8x256xf32>
    %61 = vector.broadcast %3 : vector<1x256xf32> to vector<8x256xf32>
    %62 = arith.mulf %60, %61 : vector<8x256xf32>
    %cst_24 = arith.constant 0.000000e+00 : f32
    %63 = vector.broadcast %cst_24 : f32 to vector<8x1xf32>
    %64 = vector.extract_strided_slice %48 {offsets = [0, 0], sizes = [8, 255], strides = [1, 1]} : vector<8x256xf32> to vector<8x255xf32>
    %65 = tpu.concatenate %63, %64 in 1 : vector<8x1xf32>, vector<8x255xf32> -> vector<8x256xf32>
    %66 = vector.broadcast %2 : vector<1x256xf32> to vector<8x256xf32>
    %67 = arith.mulf %65, %66 : vector<8x256xf32>
    %cst_25 = arith.constant 0.000000e+00 : f32
    %68 = vector.broadcast %cst_25 : f32 to vector<8x1xf32>
    %69 = vector.extract_strided_slice %48 {offsets = [0, 1], sizes = [8, 255], strides = [1, 1]} : vector<8x256xf32> to vector<8x255xf32>
    %70 = tpu.concatenate %69, %68 in 1 : vector<8x255xf32>, vector<8x1xf32> -> vector<8x256xf32>
    %71 = vector.broadcast %3 : vector<1x256xf32> to vector<8x256xf32>
    %72 = arith.mulf %70, %71 : vector<8x256xf32>
    %cst_26 = arith.constant 0.000000e+00 : f32
    %73 = vector.broadcast %cst_26 : f32 to vector<8x15xf32>
    %74 = vector.extract_strided_slice %48 {offsets = [0, 15], sizes = [8, 241], strides = [1, 1]} : vector<8x256xf32> to vector<8x241xf32>
    %75 = tpu.concatenate %74, %73 in 1 : vector<8x241xf32>, vector<8x15xf32> -> vector<8x256xf32>
    %76 = vector.broadcast %2 : vector<1x256xf32> to vector<8x256xf32>
    %77 = arith.mulf %75, %76 : vector<8x256xf32>
    %cst_27 = arith.constant 0.000000e+00 : f32
    %78 = vector.broadcast %cst_27 : f32 to vector<8x16xf32>
    %79 = vector.extract_strided_slice %48 {offsets = [0, 16], sizes = [8, 240], strides = [1, 1]} : vector<8x256xf32> to vector<8x240xf32>
    %80 = tpu.concatenate %79, %78 in 1 : vector<8x240xf32>, vector<8x16xf32> -> vector<8x256xf32>
    %cst_28 = arith.constant 0.000000e+00 : f32
    %81 = vector.broadcast %cst_28 : f32 to vector<8x17xf32>
    %82 = vector.extract_strided_slice %48 {offsets = [0, 17], sizes = [8, 239], strides = [1, 1]} : vector<8x256xf32> to vector<8x239xf32>
    %83 = tpu.concatenate %82, %81 in 1 : vector<8x239xf32>, vector<8x17xf32> -> vector<8x256xf32>
    %84 = vector.broadcast %3 : vector<1x256xf32> to vector<8x256xf32>
    %85 = arith.mulf %83, %84 : vector<8x256xf32>
    %86 = tpu.concatenate %54, %57, %62, %67, %48, %72, %77, %80, %85 in 0 : vector<8x256xf32>, vector<8x256xf32>, vector<8x256xf32>, vector<8x256xf32>, vector<8x256xf32>, vector<8x256xf32>, vector<8x256xf32>, vector<8x256xf32>, vector<8x256xf32> -> vector<72x256xf32>
    %cst_29 = arith.constant dense<0.000000e+00> : vector<12x256xf32>
    %87 = tpu.matmul %49, %86, %cst_29 {dimension_numbers = #tpu.dot_dimension_numbers<[1], [0], [0], [1], [0, 0, 1, 1], [], []>} : vector<12x72xf32>, vector<72x256xf32>, vector<12x256xf32> -> vector<12x256xf32>
    %88 = vector.extract_strided_slice %42 {offsets = [8, 0], sizes = [8, 256], strides = [1, 1]} : vector<20x256xf32> to vector<8x256xf32>
    %89 = vector.extract_strided_slice %87 {offsets = [0, 0], sizes = [8, 256], strides = [1, 1]} : vector<12x256xf32> to vector<8x256xf32>
    %90 = arith.addf %88, %89 : vector<8x256xf32>
    %c0_30 = arith.constant 0 : index
    %c0_31 = arith.constant 0 : index
    %91 = vector.load %arg8[%c0_30, %c0_31] : memref<8x1xf32, #tpu.memory_space<vmem>>, vector<8x1xf32>
    %92 = vector.broadcast %91 : vector<8x1xf32> to vector<8x256xf32>
    %93 = arith.addf %90, %92 : vector<8x256xf32>
    %cst_32 = arith.constant 0.000000e+00 : f32
    %94 = vector.broadcast %cst_32 : f32 to vector<8x256xf32>
    %95 = arith.maximumf %93, %94 : vector<8x256xf32>
    %c0_33 = arith.constant 0 : index
    %c0_34 = arith.constant 0 : index
    %96 = vector.load %arg6[%c0_33, %c0_34] : memref<4x72xf32, #tpu.memory_space<vmem>>, vector<4x72xf32>
    %cst_35 = arith.constant 0.000000e+00 : f32
    %97 = vector.broadcast %cst_35 : f32 to vector<8x17xf32>
    %98 = vector.extract_strided_slice %95 {offsets = [0, 0], sizes = [8, 239], strides = [1, 1]} : vector<8x256xf32> to vector<8x239xf32>
    %99 = tpu.concatenate %97, %98 in 1 : vector<8x17xf32>, vector<8x239xf32> -> vector<8x256xf32>
    %100 = vector.broadcast %2 : vector<1x256xf32> to vector<8x256xf32>
    %101 = arith.mulf %99, %100 : vector<8x256xf32>
    %cst_36 = arith.constant 0.000000e+00 : f32
    %102 = vector.broadcast %cst_36 : f32 to vector<8x16xf32>
    %103 = vector.extract_strided_slice %95 {offsets = [0, 0], sizes = [8, 240], strides = [1, 1]} : vector<8x256xf32> to vector<8x240xf32>
    %104 = tpu.concatenate %102, %103 in 1 : vector<8x16xf32>, vector<8x240xf32> -> vector<8x256xf32>
    %cst_37 = arith.constant 0.000000e+00 : f32
    %105 = vector.broadcast %cst_37 : f32 to vector<8x15xf32>
    %106 = vector.extract_strided_slice %95 {offsets = [0, 0], sizes = [8, 241], strides = [1, 1]} : vector<8x256xf32> to vector<8x241xf32>
    %107 = tpu.concatenate %105, %106 in 1 : vector<8x15xf32>, vector<8x241xf32> -> vector<8x256xf32>
    %108 = vector.broadcast %3 : vector<1x256xf32> to vector<8x256xf32>
    %109 = arith.mulf %107, %108 : vector<8x256xf32>
    %cst_38 = arith.constant 0.000000e+00 : f32
    %110 = vector.broadcast %cst_38 : f32 to vector<8x1xf32>
    %111 = vector.extract_strided_slice %95 {offsets = [0, 0], sizes = [8, 255], strides = [1, 1]} : vector<8x256xf32> to vector<8x255xf32>
    %112 = tpu.concatenate %110, %111 in 1 : vector<8x1xf32>, vector<8x255xf32> -> vector<8x256xf32>
    %113 = vector.broadcast %2 : vector<1x256xf32> to vector<8x256xf32>
    %114 = arith.mulf %112, %113 : vector<8x256xf32>
    %cst_39 = arith.constant 0.000000e+00 : f32
    %115 = vector.broadcast %cst_39 : f32 to vector<8x1xf32>
    %116 = vector.extract_strided_slice %95 {offsets = [0, 1], sizes = [8, 255], strides = [1, 1]} : vector<8x256xf32> to vector<8x255xf32>
    %117 = tpu.concatenate %116, %115 in 1 : vector<8x255xf32>, vector<8x1xf32> -> vector<8x256xf32>
    %118 = vector.broadcast %3 : vector<1x256xf32> to vector<8x256xf32>
    %119 = arith.mulf %117, %118 : vector<8x256xf32>
    %cst_40 = arith.constant 0.000000e+00 : f32
    %120 = vector.broadcast %cst_40 : f32 to vector<8x15xf32>
    %121 = vector.extract_strided_slice %95 {offsets = [0, 15], sizes = [8, 241], strides = [1, 1]} : vector<8x256xf32> to vector<8x241xf32>
    %122 = tpu.concatenate %121, %120 in 1 : vector<8x241xf32>, vector<8x15xf32> -> vector<8x256xf32>
    %123 = vector.broadcast %2 : vector<1x256xf32> to vector<8x256xf32>
    %124 = arith.mulf %122, %123 : vector<8x256xf32>
    %cst_41 = arith.constant 0.000000e+00 : f32
    %125 = vector.broadcast %cst_41 : f32 to vector<8x16xf32>
    %126 = vector.extract_strided_slice %95 {offsets = [0, 16], sizes = [8, 240], strides = [1, 1]} : vector<8x256xf32> to vector<8x240xf32>
    %127 = tpu.concatenate %126, %125 in 1 : vector<8x240xf32>, vector<8x16xf32> -> vector<8x256xf32>
    %cst_42 = arith.constant 0.000000e+00 : f32
    %128 = vector.broadcast %cst_42 : f32 to vector<8x17xf32>
    %129 = vector.extract_strided_slice %95 {offsets = [0, 17], sizes = [8, 239], strides = [1, 1]} : vector<8x256xf32> to vector<8x239xf32>
    %130 = tpu.concatenate %129, %128 in 1 : vector<8x239xf32>, vector<8x17xf32> -> vector<8x256xf32>
    %131 = vector.broadcast %3 : vector<1x256xf32> to vector<8x256xf32>
    %132 = arith.mulf %130, %131 : vector<8x256xf32>
    %133 = tpu.concatenate %101, %104, %109, %114, %95, %119, %124, %127, %132 in 0 : vector<8x256xf32>, vector<8x256xf32>, vector<8x256xf32>, vector<8x256xf32>, vector<8x256xf32>, vector<8x256xf32>, vector<8x256xf32>, vector<8x256xf32>, vector<8x256xf32> -> vector<72x256xf32>
    %cst_43 = arith.constant dense<0.000000e+00> : vector<4x256xf32>
    %134 = tpu.matmul %96, %133, %cst_43 {dimension_numbers = #tpu.dot_dimension_numbers<[1], [0], [0], [1], [0, 0, 1, 1], [], []>} : vector<4x72xf32>, vector<72x256xf32>, vector<4x256xf32> -> vector<4x256xf32>
    %135 = vector.extract_strided_slice %42 {offsets = [16, 0], sizes = [4, 256], strides = [1, 1]} : vector<20x256xf32> to vector<4x256xf32>
    %136 = vector.extract_strided_slice %87 {offsets = [8, 0], sizes = [4, 256], strides = [1, 1]} : vector<12x256xf32> to vector<4x256xf32>
    %137 = arith.addf %135, %136 : vector<4x256xf32>
    %138 = arith.addf %137, %134 : vector<4x256xf32>
    %c0_44 = arith.constant 0 : index
    %c0_45 = arith.constant 0 : index
    %139 = vector.load %arg9[%c0_44, %c0_45] : memref<4x1xf32, #tpu.memory_space<vmem>>, vector<4x1xf32>
    %140 = vector.broadcast %139 : vector<4x1xf32> to vector<4x256xf32>
    %141 = arith.addf %138, %140 : vector<4x256xf32>
    %142 = arith.addf %141, %1 : vector<4x256xf32>
    %c0_46 = arith.constant 0 : index
    %c0_47 = arith.constant 0 : index
    %c0_48 = arith.constant 0 : index
    %143 = vector.load %arg10[%c0_46, %c0_47, %c0_48] : memref<1x4x256xf32, #tpu.memory_space<vmem>>, vector<1x4x256xf32>
    %144 = vector.shape_cast %143 : vector<1x4x256xf32> to vector<4x256xf32>
    %145 = vector.shape_cast %142 : vector<4x256xf32> to vector<1x4x256xf32>
    tpu.vector_store %arg10[%c0_46, %c0_47, %c0_48], %145 {strides = array<i32>} : memref<1x4x256xf32, #tpu.memory_space<vmem>>, vector<1x4x256xf32>,
    return
  }
  func.func @transform_0(%arg0: i32) -> (i32, i32, i32) {
    %c0_i32 = arith.constant 0 : i32
    %c0_i32_0 = arith.constant 0 : i32
    %c0_i32_1 = arith.constant 0 : i32
    return %arg0, %c0_i32, %c0_i32_0 : i32, i32, i32
  }
  func.func @transform_1(%arg0: i32) -> (i32, i32) {
    %c0_i32 = arith.constant 0 : i32
    %c0_i32_0 = arith.constant 0 : i32
    %c0_i32_1 = arith.constant 0 : i32
    return %c0_i32, %c0_i32_0 : i32, i32
  }
  func.func @transform_2(%arg0: i32) -> (i32, i32) {
    %c0_i32 = arith.constant 0 : i32
    %c0_i32_0 = arith.constant 0 : i32
    %c0_i32_1 = arith.constant 0 : i32
    return %c0_i32, %c0_i32_0 : i32, i32
  }
  func.func @transform_3(%arg0: i32) -> (i32, i32) {
    %c0_i32 = arith.constant 0 : i32
    %c0_i32_0 = arith.constant 0 : i32
    %c0_i32_1 = arith.constant 0 : i32
    return %c0_i32, %c0_i32_0 : i32, i32
  }
  func.func @transform_4(%arg0: i32) -> (i32, i32) {
    %c0_i32 = arith.constant 0 : i32
    %c0_i32_0 = arith.constant 0 : i32
    %c0_i32_1 = arith.constant 0 : i32
    return %c0_i32, %c0_i32_0 : i32, i32
  }
  func.func @transform_5(%arg0: i32) -> (i32, i32) {
    %c0_i32 = arith.constant 0 : i32
    %c0_i32_0 = arith.constant 0 : i32
    %c0_i32_1 = arith.constant 0 : i32
    return %c0_i32, %c0_i32_0 : i32, i32
  }
  func.func @transform_6(%arg0: i32) -> (i32, i32) {
    %c0_i32 = arith.constant 0 : i32
    %c0_i32_0 = arith.constant 0 : i32
    %c0_i32_1 = arith.constant 0 : i32
    return %c0_i32, %c0_i32_0 : i32, i32
  }
  func.func @transform_7(%arg0: i32) -> (i32, i32) {
    %c0_i32 = arith.constant 0 : i32
    %c0_i32_0 = arith.constant 0 : i32
    %c0_i32_1 = arith.constant 0 : i32
    return %c0_i32, %c0_i32_0 : i32, i32
  }
  func.func @transform_8(%arg0: i32) -> (i32, i32) {
    %c0_i32 = arith.constant 0 : i32
    %c0_i32_0 = arith.constant 0 : i32
    %c0_i32_1 = arith.constant 0 : i32
    return %c0_i32, %c0_i32_0 : i32, i32
  }
  func.func @transform_9(%arg0: i32) -> (i32, i32, i32) {
    %c0_i32 = arith.constant 0 : i32
    %c0_i32_0 = arith.constant 0 : i32
    %c0_i32_1 = arith.constant 0 : i32
    return %arg0, %c0_i32, %c0_i32_0 : i32, i32, i32
  }
}

</mosaic_0001>

<llo_original>
// kernel: rdb_forward.1
$region0: #{rdb_forward.1}
  #allocation0 [shape = 'u32[]', space=smem, size = 0x4, offset = 0x4, fixed_abs, tag = 'smem constant byte address 0x4 - core index']
  #allocation1 [shape = 'u32[144,128]{1,0:T(1,128)}', space=vmem, size = 0x12000, scoped, tag = 'internal scratch']
  %s0 = inlined_call_operand.vmem [shape: f32[2,4,256], index: 0, kind: input, shape index: {}]
  %s1 = inlined_call_operand.vmem [shape: f32[1,256], index: 1, kind: input, shape index: {}]
  %s2 = inlined_call_operand.vmem [shape: f32[1,256], index: 2, kind: input, shape index: {}]
  %s3 = inlined_call_operand.vmem [shape: f32[20,36], index: 3, kind: input, shape index: {}]
  %s4 = inlined_call_operand.vmem [shape: f32[12,72], index: 4, kind: input, shape index: {}]
  %s5 = inlined_call_operand.vmem [shape: f32[4,72], index: 5, kind: input, shape index: {}]
  %s6 = inlined_call_operand.vmem [shape: f32[8,1], index: 6, kind: input, shape index: {}]
  %s7 = inlined_call_operand.vmem [shape: f32[8,1], index: 7, kind: input, shape index: {}]
  %s8 = inlined_call_operand.vmem [shape: f32[4,1], index: 8, kind: input, shape index: {}]
  %s9 = inlined_call_operand.vmem [shape: f32[2,4,256], index: 9, kind: output, shape index: {}]
  %s10 = sld [smem:[#allocation0]]
  $region69: #{rdb_forward.1} parent=0
    _
  %s12 = ssub.s32 1, %s10
  %s13 = scalar_select 0, %s12, %s10
  loop: start=0, step=1, limit=4
  $region2: #{rdb_forward.1} parent=0 // loop_pre_header
    _
  $region3: #{rdb_forward.1} parent=0 // loop_header
    %s15 = sphi 0, %s19
    %p16 = scmp.ge.s32.totalorder %s15, 4
    %s25 = sphi 0, %s27
    %s28 = sphi 0, %s25
    %s29 = sphi 0, %s28
    %s45 = sphi 0, %s29
    %s49 = sphi 0, %s49
    %s51 = sphi 0, %s49
    %s52 = sphi 0, %s51
    %s66 = sphi 0, %s52
    %s70 = sphi 0, %s70
    %s72 = sphi 0, %s70
    %s73 = sphi 0, %s72
    %s87 = sphi 0, %s73
    %s91 = sphi 0, %s91
    %s93 = sphi 0, %s91
    %s94 = sphi 0, %s93
    %s108 = sphi 0, %s94
    %s112 = sphi 0, %s112
    %s114 = sphi 0, %s112
    %s115 = sphi 0, %s114
    %s129 = sphi 0, %s115
    %s133 = sphi 0, %s133
    %s135 = sphi 0, %s133
    %s136 = sphi 0, %s135
    %s150 = sphi 0, %s136
    %s154 = sphi 0, %s154
    %s156 = sphi 0, %s154
    %s157 = sphi 0, %s156
    %s171 = sphi 0, %s157
    %s175 = sphi 0, %s175
    %s177 = sphi 0, %s175
    %s178 = sphi 0, %s177
    %s192 = sphi 0, %s178
    %s196 = sphi 0, %s196
    %s198 = sphi 0, %s196
    %s199 = sphi 0, %s198
    %s213 = sphi 0, %s199
    %s219 = sphi 0, %s221
    %s222 = sphi 0, %s219
    %s223 = sphi 0, %s222
    %s239 = sphi 0, %s223
  $region4: #{rdb_forward.1} parent=0 // loop_header_branch
    %18 = sbr.rel (%p16) target = $region8
  $region5: #{rdb_forward.1} parent=0 // loop_body
    %s20 = ssub.s32 %s15, 1
    %s21 = ssub.s32 %s15, 2
    %s22 = sadd.s32 %s15, 1
    %s23 = ssub.s32 %s15, %s22
    %p24 = scmp.eq.s32.totalorder %s23, 0
    %s26 = sadd.s32 %s25, 1
    %s27 = scalar_select %p24, %s25, %s26
    %p30 = pneg %p24
    %p31 = scmp.eq.s32.totalorder %s15, 1
    %p32 = por %p30, %p31
    %p33 = scmp.ne.s32.totalorder %s25, %s28
    %p34 = scmp.eq.s32.totalorder %s15, 0
    %p35 = por %p33, %p34
    %p36 = scmp.ne.s32.totalorder %s25, %s28
    %p37 = scmp.eq.s32.totalorder %s20, 1
    %p38 = por %p36, %p37
    %p39 = scmp.ne.s32.totalorder %s28, %s29
    %p40 = scmp.eq.s32.totalorder %s20, 0
    %p41 = por %p39, %p40
    %p42 = scmp.ne.s32.totalorder %s28, %s29
    %p43 = scmp.eq.s32.totalorder %s21, 1
    %p44 = por %p42, %p43
    %p46 = scmp.ne.s32.totalorder %s29, %s45
    %p47 = scmp.eq.s32.totalorder %s21, 0
    %p48 = por %p46, %p47
    %s50 = sadd.s32 %s49, 1
    %p53 = scmp.eq.s32.totalorder %s15, 1
    %p54 = scmp.ne.s32.totalorder %s49, %s51
    %p55 = scmp.eq.s32.totalorder %s15, 0
    %p56 = por %p54, %p55
    %p57 = scmp.ne.s32.totalorder %s49, %s51
    %p58 = scmp.eq.s32.totalorder %s20, 1
    %p59 = por %p57, %p58
    %p60 = scmp.ne.s32.totalorder %s51, %s52
    %p61 = scmp.eq.s32.totalorder %s20, 0
    %p62 = por %p60, %p61
    %p63 = scmp.ne.s32.totalorder %s51, %s52
    %p64 = scmp.eq.s32.totalorder %s21, 1
    %p65 = por %p63, %p64
    %p67 = scmp.ne.s32.totalorder %s52, %s66
    %p68 = scmp.eq.s32.totalorder %s21, 0
    %p69 = por %p67, %p68
    %s71 = sadd.s32 %s70, 1
    %p74 = scmp.eq.s32.totalorder %s15, 1
    %p75 = scmp.ne.s32.totalorder %s70, %s72
    %p76 = scmp.eq.s32.totalorder %s15, 0
    %p77 = por %p75, %p76
    %p78 = scmp.ne.s32.totalorder %s70, %s72
    %p79 = scmp.eq.s32.totalorder %s20, 1
    %p80 = por %p78, %p79
    %p81 = scmp.ne.s32.totalorder %s72, %s73
    %p82 = scmp.eq.s32.totalorder %s20, 0
    %p83 = por %p81, %p82
    %p84 = scmp.ne.s32.totalorder %s72, %s73
    %p85 = scmp.eq.s32.totalorder %s21, 1
    %p86 = por %p84, %p85
    %p88 = scmp.ne.s32.totalorder %s73, %s87
    %p89 = scmp.eq.s32.totalorder %s21, 0
    %p90 = por %p88, %p89
    %s92 = sadd.s32 %s91, 1
    %p95 = scmp.eq.s32.totalorder %s15, 1
    %p96 = scmp.ne.s32.totalorder %s91, %s93
    %p97 = scmp.eq.s32.totalorder %s15, 0
    %p98 = por %p96, %p97
    %p99 = scmp.ne.s32.totalorder %s91, %s93
    %p100 = scmp.eq.s32.totalorder %s20, 1
    %p101 = por %p99, %p100
    %p102 = scmp.ne.s32.totalorder %s93, %s94
    %p103 = scmp.eq.s32.totalorder %s20, 0
    %p104 = por %p102, %p103
    %p105 = scmp.ne.s32.totalorder %s93, %s94
    %p106 = scmp.eq.s32.totalorder %s21, 1
    %p107 = por %p105, %p106
    %p109 = scmp.ne.s32.totalorder %s94, %s108
    %p110 = scmp.eq.s32.totalorder %s21, 0
    %p111 = por %p109, %p110
    %s113 = sadd.s32 %s112, 1
    %p116 = scmp.eq.s32.totalorder %s15, 1
    %p117 = scmp.ne.s32.totalorder %s112, %s114
    %p118 = scmp.eq.s32.totalorder %s15, 0
    %p119 = por %p117, %p118
    %p120 = scmp.ne.s32.totalorder %s112, %s114
    %p121 = scmp.eq.s32.totalorder %s20, 1
    %p122 = por %p120, %p121
    %p123 = scmp.ne.s32.totalorder %s114, %s115
    %p124 = scmp.eq.s32.totalorder %s20, 0
    %p125 = por %p123, %p124
    %p126 = scmp.ne.s32.totalorder %s114, %s115
    %p127 = scmp.eq.s32.totalorder %s21, 1
    %p128 = por %p126, %p127
    %p130 = scmp.ne.s32.totalorder %s115, %s129
    %p131 = scmp.eq.s32.totalorder %s21, 0
    %p132 = por %p130, %p131
    %s134 = sadd.s32 %s133, 1
    %p137 = scmp.eq.s32.totalorder %s15, 1
    %p138 = scmp.ne.s32.totalorder %s133, %s135
    %p139 = scmp.eq.s32.totalorder %s15, 0
    %p140 = por %p138, %p139
    %p141 = scmp.ne.s32.totalorder %s133, %s135
    %p142 = scmp.eq.s32.totalorder %s20, 1
    %p143 = por %p141, %p142
    %p144 = scmp.ne.s32.totalorder %s135, %s136
    %p145 = scmp.eq.s32.totalorder %s20, 0
    %p146 = por %p144, %p145
    %p147 = scmp.ne.s32.totalorder %s135, %s136
    %p148 = scmp.eq.s32.totalorder %s21, 1
    %p149 = por %p147, %p148
    %p151 = scmp.ne.s32.totalorder %s136, %s150
    %p152 = scmp.eq.s32.totalorder %s21, 0
    %p153 = por %p151, %p152
    %s155 = sadd.s32 %s154, 1
    %p158 = scmp.eq.s32.totalorder %s15, 1
    %p159 = scmp.ne.s32.totalorder %s154, %s156
    %p160 = scmp.eq.s32.totalorder %s15, 0
    %p161 = por %p159, %p160
    %p162 = scmp.ne.s32.totalorder %s154, %s156
    %p163 = scmp.eq.s32.totalorder %s20, 1
    %p164 = por %p162, %p163
    %p165 = scmp.ne.s32.totalorder %s156, %s157
    %p166 = scmp.eq.s32.totalorder %s20, 0
    %p167 = por %p165, %p166
    %p168 = scmp.ne.s32.totalorder %s156, %s157
    %p169 = scmp.eq.s32.totalorder %s21, 1
    %p170 = por %p168, %p169
    %p172 = scmp.ne.s32.totalorder %s157, %s171
    %p173 = scmp.eq.s32.totalorder %s21, 0
    %p174 = por %p172, %p173
    %s176 = sadd.s32 %s175, 1
    %p179 = scmp.eq.s32.totalorder %s15, 1
    %p180 = scmp.ne.s32.totalorder %s175, %s177
    %p181 = scmp.eq.s32.totalorder %s15, 0
    %p182 = por %p180, %p181
    %p183 = scmp.ne.s32.totalorder %s175, %s177
    %p184 = scmp.eq.s32.totalorder %s20, 1
    %p185 = por %p183, %p184
    %p186 = scmp.ne.s32.totalorder %s177, %s178
    %p187 = scmp.eq.s32.totalorder %s20, 0
    %p188 = por %p186, %p187
    %p189 = scmp.ne.s32.totalorder %s177, %s178
    %p190 = scmp.eq.s32.totalorder %s21, 1
    %p191 = por %p189, %p190
    %p193 = scmp.ne.s32.totalorder %s178, %s192
    %p194 = scmp.eq.s32.totalorder %s21, 0
    %p195 = por %p193, %p194
    %s197 = sadd.s32 %s196, 1
    %p200 = scmp.eq.s32.totalorder %s15, 1
    %p201 = scmp.ne.s32.totalorder %s196, %s198
    %p202 = scmp.eq.s32.totalorder %s15, 0
    %p203 = por %p201, %p202
    %p204 = scmp.ne.s32.totalorder %s196, %s198
    %p205 = scmp.eq.s32.totalorder %s20, 1
    %p206 = por %p204, %p205
    %p207 = scmp.ne.s32.totalorder %s198, %s199
    %p208 = scmp.eq.s32.totalorder %s20, 0
    %p209 = por %p207, %p208
    %p210 = scmp.ne.s32.totalorder %s198, %s199
    %p211 = scmp.eq.s32.totalorder %s21, 1
    %p212 = por %p210, %p211
    %p214 = scmp.ne.s32.totalorder %s199, %s213
    %p215 = scmp.eq.s32.totalorder %s21, 0
    %p216 = por %p214, %p215
    %s217 = ssub.s32 %s15, %s22
    %p218 = scmp.eq.s32.totalorder %s217, 0
    %s220 = sadd.s32 %s219, 1
    %s221 = scalar_select %p218, %s219, %s220
    %p224 = pneg %p218
    %p225 = scmp.eq.s32.totalorder %s15, 1
    %p226 = por %p224, %p225
    %p227 = scmp.ne.s32.totalorder %s219, %s222
    %p228 = scmp.eq.s32.totalorder %s15, 0
    %p229 = por %p227, %p228
    %p230 = scmp.ne.s32.totalorder %s219, %s222
    %p231 = scmp.eq.s32.totalorder %s20, 1
    %p232 = por %p230, %p231
    %p233 = scmp.ne.s32.totalorder %s222, %s223
    %p234 = scmp.eq.s32.totalorder %s20, 0
    %p235 = por %p233, %p234
    %p236 = scmp.ne.s32.totalorder %s222, %s223
    %p237 = scmp.eq.s32.totalorder %s21, 1
    %p238 = por %p236, %p237
    %p240 = scmp.ne.s32.totalorder %s223, %s239
    %p241 = scmp.eq.s32.totalorder %s21, 0
    %p242 = por %p240, %p241
    %p243 = scmp.le.s32.totalorder 1, %s15
    %p244 = scmp.lt.s32.totalorder %s15, 3
    %p245 = pnand %p243, %p244
    %p246 = pneg %p245
    // Predicated region
    $region9: #{rdb_forward.1} parent=5 // pred_check
      _
    $region10: #{rdb_forward.1} parent=5 // pred_check_branch
      %248 = sbr.rel (%p245) target = $region12
    $region11: #{rdb_forward.1} parent=5 // pred_region
      %s249 = ssub.s32 %s15, 1
      // Predicated region
      $region13: #{rdb_forward.1} parent=11 // pred_check
        %p250 = pneg %p62
      $region14: #{rdb_forward.1} parent=11 // pred_check_branch
        %252 = sbr.rel (%p250) target = $region16
      $region15: #{rdb_forward.1} parent=11 // pred_region
        _
      $region16: #{rdb_forward.1} parent=11 // pred_fallthru
        _
      // Predicated region
      $region17: #{rdb_forward.1} parent=11 // pred_check
        %p253 = pneg %p83
      $region18: #{rdb_forward.1} parent=11 // pred_check_branch
        %255 = sbr.rel (%p253) target = $region20
      $region19: #{rdb_forward.1} parent=11 // pred_region
        _
      $region20: #{rdb_forward.1} parent=11 // pred_fallthru
        _
      // Predicated region
      $region21: #{rdb_forward.1} parent=11 // pred_check
        %p256 = pneg %p104
      $region22: #{rdb_forward.1} parent=11 // pred_check_branch
        %258 = sbr.rel (%p256) target = $region24
      $region23: #{rdb_forward.1} parent=11 // pred_region
        _
      $region24: #{rdb_forward.1} parent=11 // pred_fallthru
        _
      // Predicated region
      $region25: #{rdb_forward.1} parent=11 // pred_check
        %p259 = pneg %p125
      $region26: #{rdb_forward.1} parent=11 // pred_check_branch
        %261 = sbr.rel (%p259) target = $region28
      $region27: #{rdb_forward.1} parent=11 // pred_region
        _
      $region28: #{rdb_forward.1} parent=11 // pred_fallthru
        _
      // Predicated region
      $region29: #{rdb_forward.1} parent=11 // pred_check
        %p262 = pneg %p146
      $region30: #{rdb_forward.1} parent=11 // pred_check_branch
        %264 = sbr.rel (%p262) target = $region32
      $region31: #{rdb_forward.1} parent=11 // pred_region
        _
      $region32: #{rdb_forward.1} parent=11 // pred_fallthru
        _
      // Predicated region
      $region33: #{rdb_forward.1} parent=11 // pred_check
        %p265 = pneg %p167
      $region34: #{rdb_forward.1} parent=11 // pred_check_branch
        %267 = sbr.rel (%p265) target = $region36
      $region35: #{rdb_forward.1} parent=11 // pred_region
        _
      $region36: #{rdb_forward.1} parent=11 // pred_fallthru
        _
      // Predicated region
      $region37: #{rdb_forward.1} parent=11 // pred_check
        %p268 = pneg %p188
      $region38: #{rdb_forward.1} parent=11 // pred_check_branch
        %270 = sbr.rel (%p268) target = $region40
      $region39: #{rdb_forward.1} parent=11 // pred_region
        _
      $region40: #{rdb_forward.1} parent=11 // pred_fallthru
        _
      // Predicated region
      $region41: #{rdb_forward.1} parent=11 // pred_check
        %p271 = pneg %p209
      $region42: #{rdb_forward.1} parent=11 // pred_check_branch
        %273 = sbr.rel (%p271) target = $region44
      $region43: #{rdb_forward.1} parent=11 // pred_region
        _
      $region44: #{rdb_forward.1} parent=11 // pred_fallthru
        _
    $region12: #{rdb_forward.1} parent=5 // pred_fallthru
      _
    %p274 = scmp.lt.s32.totalorder %s15, 2
    // Predicated region
    $region45: #{rdb_forward.1} parent=5 // pred_check
      %p275 = pneg %p274
    $region46: #{rdb_forward.1} parent=5 // pred_check_branch
      %277 = sbr.rel (%p275) target = $region48
    $region47: #{rdb_forward.1} parent=5 // pred_region
      // Predicated region
      $region49: #{rdb_forward.1} parent=47 // pred_check
        %p278 = pneg %p35
      $region50: #{rdb_forward.1} parent=47 // pred_check_branch
        %280 = sbr.rel (%p278) target = $region52
      $region51: #{rdb_forward.1} parent=47 // pred_region
        %p281 = scmp.lt.s32.totalorder %s15, 1
        %s282 = scalar_select %p281, %s15, 1
        %s283 = smul.addr %s282, 2
        %s284 = smul.addr %s283, 4
        %s285 = scalar_lea.vmem %s0, %s284
      $region52: #{rdb_forward.1} parent=47 // pred_fallthru
        _
    $region48: #{rdb_forward.1} parent=5 // pred_fallthru
      _
    %p286 = scmp.le.s32.totalorder 1, %s15
    %p287 = scmp.lt.s32.totalorder %s15, 3
    %p288 = pnand %p286, %p287
    %p289 = pneg %p288
    // Predicated region
    $region53: #{rdb_forward.1} parent=5 // pred_check
      _
    $region54: #{rdb_forward.1} parent=5 // pred_check_branch
      %291 = sbr.rel (%p288) target = $region56
    $region55: #{rdb_forward.1} parent=5 // pred_region
      %s292 = ssub.s32 %s15, 1
      %p293 = scmp.lt.s32.totalorder %s20, 1
      %s294 = scalar_select %p293, %s20, 1
      %s295 = smul.addr %s294, 2
      %s296 = smul.addr %s295, 4
      %s297 = scalar_lea.vmem %s0, %s296
      %p298 = pneg %p41
      %p299 = pneg %p38
      %p300 = pneg %p62
      %p301 = pneg %p59
      %p302 = pneg %p83
      %p303 = pneg %p80
      %p304 = pneg %p104
      %p305 = pneg %p101
      %p306 = pneg %p125
      %p307 = pneg %p122
      %p308 = pneg %p146
      %p309 = pneg %p143
      %p310 = pneg %p167
      %p311 = pneg %p164
      %p312 = pneg %p188
      %p313 = pneg %p185
      %p314 = pneg %p209
      %p315 = pneg %p206
      %p316 = pneg %p235
      %p317 = pneg %p232
      %p318 = scmp.lt.s32.totalorder %s20, 1
      %s319 = scalar_select %p318, %s20, 1
      %s320 = smul.addr %s319, 2
      %s321 = smul.addr %s320, 4
      %s322 = scalar_lea.vmem %s9, %s321
      %p323 = scmp.lt.s32.totalorder %s20, 1
      %s324 = scalar_select %p323, %s20, 1
      %s325 = smul.addr %s324, 2
      %s326 = smul.addr %s325, 4
      %s327 = scalar_lea.vmem %s0, %s326
      %p328 = scmp.lt.s32.totalorder %s20, 1
      %s329 = scalar_select %p328, %s20, 1
      %s330 = smul.addr %s329, 2
      %s331 = smul.addr %s330, 4
      %s332 = scalar_lea.vmem %s9, %s331
      %v333 = vld [vmem:[%s327] sm:$0xff]
      %v334 = vld [vmem:[%s1] sm:$0x3]
      %v335 = vld [vmem:[%s2] sm:$0x3]
      %v336 = vld [vmem:[%s3] sm:$0xff]
      %v337 = vld [vmem:[%s3 + $0x8] sm:$0xff]
      %v338 = vld [vmem:[%s3 + $0x10] sm:$0xf]
      %v340 = vcombine.high %v333, %v333
      %341 = vrot.lane.b32.xlu0 %v333, 17
      %v342 = vpop.permute.xlu0 %341
      %343 = vrot.lane.b32.xlu0 %v340, 17
      %v344 = vpop.permute.xlu0 %343
      %vm345 = vcmask 138240
      %v346 = vsel %vm345, %v342, %v344
      %v349 = vsel %vm345, 0.0, %v342
      %v351 = vlaneseq
      %v352 = vshrl.u32 %v351, 7
      %v353 = vsub.s32 0, %v352
      %v354 = vrot.slane %v334, %v353
      %v355 = vlaneseq
      %v356 = vshrl.u32 %v355, 7
      %v357 = vsub.s32 1, %v356
      %v358 = vrot.slane %v334, %v357
      %v361 = vmul.f32 %v349, %v354
      %v362 = vmul.f32 %v346, %v358
      %363 = vrot.lane.b32.xlu0 %v333, 16
      %v364 = vpop.permute.xlu0 %363
      %365 = vrot.lane.b32.xlu0 %v340, 16
      %v366 = vpop.permute.xlu0 %365
      %vm367 = vcmask 130048
      %v368 = vsel %vm367, %v364, %v366
      %v370 = vsel %vm367, 0.0, %v364
      %371 = vrot.lane.b32.xlu0 %v333, 15
      %v372 = vpop.permute.xlu0 %371
      %373 = vrot.lane.b32.xlu0 %v340, 15
      %v374 = vpop.permute.xlu0 %373
      %vm375 = vcmask 121856
      %v376 = vsel %vm375, %v372, %v374
      %v379 = vsel %vm375, 0.0, %v372
      %v381 = vlaneseq
      %v382 = vshrl.u32 %v381, 7
      %v383 = vsub.s32 0, %v382
      %v384 = vrot.slane %v335, %v383
      %v385 = vlaneseq
      %v386 = vshrl.u32 %v385, 7
      %v387 = vsub.s32 1, %v386
      %v388 = vrot.slane %v335, %v387
      %v391 = vmul.f32 %v379, %v384
      %v392 = vmul.f32 %v376, %v388
      %393 = vrot.lane.b32.xlu0 %v333, 1
      %v394 = vpop.permute.xlu0 %393
      %395 = vrot.lane.b32.xlu0 %v340, 1
      %v396 = vpop.permute.xlu0 %395
      %vm397 = vcmask 7168
      %v398 = vsel %vm397, %v394, %v396
      %v401 = vsel %vm397, 0.0, %v394
      %v402 = vmul.f32 %v401, %v354
      %v403 = vmul.f32 %v398, %v358
      %404 = vrot.lane.b32.xlu0 %v333, 127
      %v405 = vpop.permute.xlu0 %404
      %406 = vrot.lane.b32.xlu0 %v340, 127
      %v407 = vpop.permute.xlu0 %406
      %vm408 = vcmask 1039360
      %v409 = vsel %vm408, %v405, %v407
      %v412 = vsel %vm408, %v407, 0.0
      %v413 = vmul.f32 %v409, %v384
      %v414 = vmul.f32 %v412, %v388
      %415 = vrot.lane.b32.xlu0 %v333, 113
      %v416 = vpop.permute.xlu0 %415
      %417 = vrot.lane.b32.xlu0 %v340, 113
      %v418 = vpop.permute.xlu0 %417
      %vm419 = vcmask 924672
      %v420 = vsel %vm419, %v416, %v418
      %v423 = vsel %vm419, %v418, 0.0
      %v424 = vmul.f32 %v420, %v354
      %v425 = vmul.f32 %v423, %v358
      %426 = vrot.lane.b32.xlu0 %v333, 112
      %v427 = vpop.permute.xlu0 %426
      %428 = vrot.lane.b32.xlu0 %v340, 112
      %v429 = vpop.permute.xlu0 %428
      %vm430 = vcmask 916480
      %v431 = vsel %vm430, %v427, %v429
      %v433 = vsel %vm430, %v429, 0.0
      %434 = vrot.lane.b32.xlu0 %v333, 111
      %v435 = vpop.permute.xlu0 %434
      %436 = vrot.lane.b32.xlu0 %v340, 111
      %v437 = vpop.permute.xlu0 %436
      %vm438 = vcmask 908288
      %v439 = vsel %vm438, %v435, %v437
      %v442 = vsel %vm438, %v437, 0.0
      %v443 = vmul.f32 %v439, %v384
      %v444 = vmul.f32 %v442, %v388
      %v446 = vrot.slane %v370, 4
      %v447 = vrot.slane %v368, 4
      %v452 = vrot.slane %v402, 4
      %v453 = vrot.slane %v403, 4
      %v459 = vrot.slane %v413, 4
      %v460 = vrot.slane %v414, 4
      %v464 = vrot.slane %v431, 4
      %v465 = vrot.slane %v433, 4
      %vm468 = vcmask 1043456
      %v469 = vsel %vm468, %v361, %v446
      %v470 = vsel %vm468, %v362, %v447
      %v471 = vsel %vm468, %v391, %v452
      %v472 = vsel %vm468, %v392, %v453
      %v473 = vsel %vm468, %v333, %v459
      %v474 = vsel %vm468, %v340, %v460
      %v475 = vsel %vm468, %v424, %v464
      %v476 = vsel %vm468, %v425, %v465
      %vm477 = vcmask 293888
      %v479 = vsel %vm477, %v336, 0
      %v482 = vsel %vm477, %v337, 0
      %v485 = vsel %vm477, %v338, 0
      %v488 = vsel %vm468, %v443, 0
      %v491 = vsel %vm468, %v444, 0
      %493 = vmatprep.subr.mxu0 %v470
      %494 = vmatpush1.msra.mxu0 %v469
      %495 = vmatprep.subr.mxu0 %v472
      %496 = vmatpush1.msra.mxu0 %v471
      %497 = vmatprep.subr.mxu0 %v474
      %498 = vmatpush1.msra.mxu0 %v473
      %499 = vmatprep.subr.mxu0 %v476
      %500 = vmatpush1.msra.mxu0 %v475
      %501 = vmatprep.subr.mxu0 %v491
      %502 = vmatpush1.msra.mxu0 %v488
      %503 = vmatprep.subr.mxu0 0.0
      %504 = vmatpush1.msra.mxu0 0.0
      %505 = vmatprep.subr.mxu0 0.0
      %506 = vmatpush1.msra.mxu0 0.0
      %507 = vmatprep.subr.mxu0 0.0
      %508 = vmatpush1.msra.mxu0 0.0
      %509 = vmatprep.subr.mxu0 0.0
      %510 = vmatpush1.msra.mxu0 0.0
      %511 = vmatprep.subr.mxu0 0.0
      %512 = vmatpush1.msra.mxu0 0.0
      %513 = vmatprep.subr.mxu0 0.0
      %514 = vmatpush1.msra.mxu0 0.0
      %515 = vmatprep.subr.mxu0 0.0
      %516 = vmatpush1.msra.mxu0 0.0
      %517 = vmatprep.subr.mxu0 0.0
      %518 = vmatpush1.msra.mxu0 0.0
      %519 = vmatprep.subr.mxu0 0.0
      %520 = vmatpush1.msra.mxu0 0.0
      %521 = vmatprep.subr.mxu0 0.0
      %522 = vmatpush1.msra.mxu0 0.0
      %523 = vmatprep.subr.mxu0 0.0
      %524 = vmatpush1.msra.mxu0 0.0
      %525 = vmatprep.subr.mxu0 0.0
      %526 = vmatpush1.msra.mxu0 0.0
      %527 = vmatprep.subr.mxu0 0.0
      %528 = vmatpush1.msra.mxu0 0.0
      %529 = vmatprep.subr.mxu0 0.0
      %530 = vmatpush1.msra.mxu0 0.0
      %531 = vmatprep.subr.mxu0 0.0
      %532 = vmatpush1.msra.mxu0 0.0
      %533 = vmatprep.subr.mxu0 0.0
      %534 = vmatpush1.msra.mxu0 0.0
      %535 = vmatprep.subr.mxu0 0.0
      %536 = vmatpush1.msra.mxu0 0.0
      %537 = vmatprep.subr.mxu0 0.0
      %538 = vmatpush1.msra.mxu0 0.0
      %539 = vmatprep.subr.mxu0 0.0
      %540 = vmatpush1.msra.mxu0 0.0
      %541 = vmatprep.subr.mxu0 0.0
      %542 = vmatpush1.msra.mxu0 0.0
      %543 = vmatprep.subr.mxu0 0.0
      %544 = vmatpush1.msra.mxu0 0.0
      %545 = vmatprep.subr.mxu0 0.0
      %546 = vmatpush1.msra.mxu0 0.0
      %547 = vmatprep.subr.mxu0 0.0
      %548 = vmatpush1.msra.mxu0 0.0
      %549 = vmatprep.subr.mxu0 0.0
      %550 = vmatpush1.msra.mxu0 0.0
      %551 = vmatprep.subr.mxu0 0.0
      %552 = vmatpush1.msra.mxu0 0.0
      %553 = vmatprep.subr.mxu0 0.0
      %554 = vmatpush1.msra.mxu0 0.0
      %555 = vmatprep.subr.mxu0 0.0
      %556 = vmatpush1.msra.mxu0 0.0
      %557 = vmatprep.mubr.f32.mxu0 0.0
      %558 = vmatmul.mubr.f32.gmra.mrb[0].mxu0 %v479
      %v559 = vpop.f32.mrb[0].mxu0
      %v560 = vadd.f32 0.0, %v559
      %v561 = vpop.f32.mrb[0].mxu0
      %v562 = vadd.f32 0.0, %v561
      %563 = vmatprep.mubr.f32.mxu0 0.0
      %564 = vmatmul.mubr.f32.gmra.mrb[0].mxu0 %v482
      %v565 = vpop.f32.mrb[0].mxu0
      %v566 = vadd.f32 0.0, %v565
      %v567 = vpop.f32.mrb[0].mxu0
      %v568 = vadd.f32 0.0, %v567
      %569 = vmatprep.mubr.f32.mxu0 0.0
      %570 = vmatmul.mubr.f32.gmra.mrb[0].mxu0 %v485
      %v571 = vpop.f32.mrb[0].mxu0
      %v572 = vadd.f32 0.0, %v571
      %v573 = vpop.f32.mrb[0].mxu0
      %v574 = vadd.f32 0.0, %v573
      %575 = vdwg.mxu0
      %v576 = vld [vmem:[%s6] sm:$0xff]
      %578 = vset.pattern.permute.xlu0 0
      %579 = vperm.xlu0 %578, %v576
      %v580 = vpop.permute.xlu0 %579
      %v582 = vadd.f32 %v560, %v580
      %v583 = vadd.f32 %v562, %v580
      %v584 = vmax.f32 %v582, 0.0
      %v585 = vmax.f32 %v583, 0.0
      %v586 = vld [vmem:[%s4] sm:$0xff]
      %v587 = vld [vmem:[%s4 + $0x8] sm:$0xf]
      %590 = vrot.lane.b32.xlu0 %v584, 17
      %v591 = vpop.permute.xlu0 %590
      %592 = vrot.lane.b32.xlu0 %v585, 17
      %v593 = vpop.permute.xlu0 %592
      %v594 = vsel %vm345, %v591, %v593
      %v597 = vsel %vm345, 0.0, %v591
      %v598 = vmul.f32 %v597, %v354
      %v599 = vmul.f32 %v594, %v358
      %600 = vrot.lane.b32.xlu0 %v584, 16
      %v601 = vpop.permute.xlu0 %600
      %602 = vrot.lane.b32.xlu0 %v585, 16
      %v603 = vpop.permute.xlu0 %602
      %v604 = vsel %vm367, %v601, %v603
      %v607 = vsel %vm367, 0.0, %v601
      %608 = vrot.lane.b32.xlu0 %v584, 15
      %v609 = vpop.permute.xlu0 %608
      %610 = vrot.lane.b32.xlu0 %v585, 15
      %v611 = vpop.permute.xlu0 %610
      %v612 = vsel %vm375, %v609, %v611
      %v615 = vsel %vm375, 0.0, %v609
      %v616 = vmul.f32 %v615, %v384
      %v617 = vmul.f32 %v612, %v388
      %618 = vrot.lane.b32.xlu0 %v584, 1
      %v619 = vpop.permute.xlu0 %618
      %620 = vrot.lane.b32.xlu0 %v585, 1
      %v621 = vpop.permute.xlu0 %620
      %v622 = vsel %vm397, %v619, %v621
      %v625 = vsel %vm397, 0.0, %v619
      %v626 = vmul.f32 %v625, %v354
      %v627 = vmul.f32 %v622, %v358
      %628 = vrot.lane.b32.xlu0 %v584, 127
      %v629 = vpop.permute.xlu0 %628
      %630 = vrot.lane.b32.xlu0 %v585, 127
      %v631 = vpop.permute.xlu0 %630
      %v632 = vsel %vm408, %v629, %v631
      %v635 = vsel %vm408, %v631, 0.0
      %v636 = vmul.f32 %v632, %v384
      %v637 = vmul.f32 %v635, %v388
      %638 = vrot.lane.b32.xlu0 %v584, 113
      %v639 = vpop.permute.xlu0 %638
      %640 = vrot.lane.b32.xlu0 %v585, 113
      %v641 = vpop.permute.xlu0 %640
      %v642 = vsel %vm419, %v639, %v641
      %v645 = vsel %vm419, %v641, 0.0
      %v646 = vmul.f32 %v642, %v354
      %v647 = vmul.f32 %v645, %v358
      %648 = vrot.lane.b32.xlu0 %v584, 112
      %v649 = vpop.permute.xlu0 %648
      %650 = vrot.lane.b32.xlu0 %v585, 112
      %v651 = vpop.permute.xlu0 %650
      %v652 = vsel %vm430, %v649, %v651
      %v655 = vsel %vm430, %v651, 0.0
      %656 = vrot.lane.b32.xlu0 %v584, 111
      %v657 = vpop.permute.xlu0 %656
      %658 = vrot.lane.b32.xlu0 %v585, 111
      %v659 = vpop.permute.xlu0 %658
      %v660 = vsel %vm438, %v657, %v659
      %v663 = vsel %vm438, %v659, 0.0
      %v664 = vmul.f32 %v660, %v384
      %v665 = vmul.f32 %v663, %v388
      %vm666 = vcmask 588800
      %v668 = vsel %vm666, %v586, 0
      %v671 = vsel %vm666, %v587, 0
      %673 = vmatprep.subr.mxu0 %v599
      %674 = vmatpush1.msra.mxu0 %v598
      %675 = vmatprep.subr.mxu0 %v604
      %676 = vmatpush1.msra.mxu0 %v607
      %677 = vmatprep.subr.mxu0 %v617
      %678 = vmatpush1.msra.mxu0 %v616
      %679 = vmatprep.subr.mxu0 %v627
      %680 = vmatpush1.msra.mxu0 %v626
      %681 = vmatprep.subr.mxu0 %v585
      %682 = vmatpush1.msra.mxu0 %v584
      %683 = vmatprep.subr.mxu0 %v637
      %684 = vmatpush1.msra.mxu0 %v636
      %685 = vmatprep.subr.mxu0 %v647
      %686 = vmatpush1.msra.mxu0 %v646
      %687 = vmatprep.subr.mxu0 %v655
      %688 = vmatpush1.msra.mxu0 %v652
      %689 = vmatprep.subr.mxu0 %v665
      %690 = vmatpush1.msra.mxu0 %v664
      %691 = vmatprep.subr.mxu0 0.0
      %692 = vmatpush1.msra.mxu0 0.0
      %693 = vmatprep.subr.mxu0 0.0
      %694 = vmatpush1.msra.mxu0 0.0
      %695 = vmatprep.subr.mxu0 0.0
      %696 = vmatpush1.msra.mxu0 0.0
      %697 = vmatprep.subr.mxu0 0.0
      %698 = vmatpush1.msra.mxu0 0.0
      %699 = vmatprep.subr.mxu0 0.0
      %700 = vmatpush1.msra.mxu0 0.0
      %701 = vmatprep.subr.mxu0 0.0
      %702 = vmatpush1.msra.mxu0 0.0
      %703 = vmatprep.subr.mxu0 0.0
      %704 = vmatpush1.msra.mxu0 0.0
      %705 = vmatprep.subr.mxu0 0.0
      %706 = vmatpush1.msra.mxu0 0.0
      %707 = vmatprep.subr.mxu0 0.0
      %708 = vmatpush1.msra.mxu0 0.0
      %709 = vmatprep.subr.mxu0 0.0
      %710 = vmatpush1.msra.mxu0 0.0
      %711 = vmatprep.subr.mxu0 0.0
      %712 = vmatpush1.msra.mxu0 0.0
      %713 = vmatprep.subr.mxu0 0.0
      %714 = vmatpush1.msra.mxu0 0.0
      %715 = vmatprep.subr.mxu0 0.0
      %716 = vmatpush1.msra.mxu0 0.0
      %717 = vmatprep.subr.mxu0 0.0
      %718 = vmatpush1.msra.mxu0 0.0
      %719 = vmatprep.subr.mxu0 0.0
      %720 = vmatpush1.msra.mxu0 0.0
      %721 = vmatprep.subr.mxu0 0.0
      %722 = vmatpush1.msra.mxu0 0.0
      %723 = vmatprep.subr.mxu0 0.0
      %724 = vmatpush1.msra.mxu0 0.0
      %725 = vmatprep.subr.mxu0 0.0
      %726 = vmatpush1.msra.mxu0 0.0
      %727 = vmatprep.subr.mxu0 0.0
      %728 = vmatpush1.msra.mxu0 0.0
      %729 = vmatprep.subr.mxu0 0.0
      %730 = vmatpush1.msra.mxu0 0.0
      %731 = vmatprep.subr.mxu0 0.0
      %732 = vmatpush1.msra.mxu0 0.0
      %733 = vmatprep.subr.mxu0 0.0
      %734 = vmatpush1.msra.mxu0 0.0
      %735 = vmatprep.subr.mxu0 0.0
      %736 = vmatpush1.msra.mxu0 0.0
      %737 = vmatprep.mubr.f32.mxu0 0.0
      %738 = vmatmul.mubr.f32.gmra.mrb[0].mxu0 %v668
      %v739 = vpop.f32.mrb[0].mxu0
      %v740 = vadd.f32 0.0, %v739
      %v741 = vpop.f32.mrb[0].mxu0
      %v742 = vadd.f32 0.0, %v741
      %743 = vmatprep.mubr.f32.mxu0 0.0
      %744 = vmatmul.mubr.f32.gmra.mrb[0].mxu0 %v671
      %v745 = vpop.f32.mrb[0].mxu0
      %v746 = vadd.f32 0.0, %v745
      %v747 = vpop.f32.mrb[0].mxu0
      %v748 = vadd.f32 0.0, %v747
      %749 = vdwg.mxu0
      %v750 = vadd.f32 %v566, %v740
      %v751 = vadd.f32 %v568, %v742
      %v752 = vld [vmem:[%s7] sm:$0xff]
      %754 = vset.pattern.permute.xlu0 0
      %755 = vperm.xlu0 %754, %v752
      %v756 = vpop.permute.xlu0 %755
      %v758 = vadd.f32 %v750, %v756
      %v759 = vadd.f32 %v751, %v756
      %v760 = vmax.f32 %v758, 0.0
      %v761 = vmax.f32 %v759, 0.0
      %v762 = vld [vmem:[%s5] sm:$0xf]
      %765 = vrot.lane.b32.xlu0 %v760, 17
      %v766 = vpop.permute.xlu0 %765
      %767 = vrot.lane.b32.xlu0 %v761, 17
      %v768 = vpop.permute.xlu0 %767
      %v769 = vsel %vm345, %v766, %v768
      %v772 = vsel %vm345, 0.0, %v766
      %v773 = vmul.f32 %v772, %v354
      %v774 = vmul.f32 %v769, %v358
      %775 = vrot.lane.b32.xlu0 %v760, 16
      %v776 = vpop.permute.xlu0 %775
      %777 = vrot.lane.b32.xlu0 %v761, 16
      %v778 = vpop.permute.xlu0 %777
      %v779 = vsel %vm367, %v776, %v778
      %v782 = vsel %vm367, 0.0, %v776
      %783 = vrot.lane.b32.xlu0 %v760, 15
      %v784 = vpop.permute.xlu0 %783
      %785 = vrot.lane.b32.xlu0 %v761, 15
      %v786 = vpop.permute.xlu0 %785
      %v787 = vsel %vm375, %v784, %v786
      %v790 = vsel %vm375, 0.0, %v784
      %v791 = vmul.f32 %v790, %v384
      %v792 = vmul.f32 %v787, %v388
      %793 = vrot.lane.b32.xlu0 %v760, 1
      %v794 = vpop.permute.xlu0 %793
      %795 = vrot.lane.b32.xlu0 %v761, 1
      %v796 = vpop.permute.xlu0 %795
      %v797 = vsel %vm397, %v794, %v796
      %v800 = vsel %vm397, 0.0, %v794
      %v801 = vmul.f32 %v800, %v354
      %v802 = vmul.f32 %v797, %v358
      %803 = vrot.lane.b32.xlu0 %v760, 127
      %v804 = vpop.permute.xlu0 %803
      %805 = vrot.lane.b32.xlu0 %v761, 127
      %v806 = vpop.permute.xlu0 %805
      %v807 = vsel %vm408, %v804, %v806
      %v810 = vsel %vm408, %v806, 0.0
      %v811 = vmul.f32 %v807, %v384
      %v812 = vmul.f32 %v810, %v388
      %813 = vrot.lane.b32.xlu0 %v760, 113
      %v814 = vpop.permute.xlu0 %813
      %815 = vrot.lane.b32.xlu0 %v761, 113
      %v816 = vpop.permute.xlu0 %815
      %v817 = vsel %vm419, %v814, %v816
      %v820 = vsel %vm419, %v816, 0.0
      %v821 = vmul.f32 %v817, %v354
      %v822 = vmul.f32 %v820, %v358
      %823 = vrot.lane.b32.xlu0 %v760, 112
      %v824 = vpop.permute.xlu0 %823
      %825 = vrot.lane.b32.xlu0 %v761, 112
      %v826 = vpop.permute.xlu0 %825
      %v827 = vsel %vm430, %v824, %v826
      %v830 = vsel %vm430, %v826, 0.0
      %831 = vrot.lane.b32.xlu0 %v760, 111
      %v832 = vpop.permute.xlu0 %831
      %833 = vrot.lane.b32.xlu0 %v761, 111
      %v834 = vpop.permute.xlu0 %833
      %v835 = vsel %vm438, %v832, %v834
      %v838 = vsel %vm438, %v834, 0.0
      %v839 = vmul.f32 %v835, %v384
      %v840 = vmul.f32 %v838, %v388
      %v842 = vsel %vm666, %v762, 0
      %844 = vmatprep.subr.mxu0 %v774
      %845 = vmatpush1.msra.mxu0 %v773
      %846 = vmatprep.subr.mxu0 %v779
      %847 = vmatpush1.msra.mxu0 %v782
      %848 = vmatprep.subr.mxu0 %v792
      %849 = vmatpush1.msra.mxu0 %v791
      %850 = vmatprep.subr.mxu0 %v802
      %851 = vmatpush1.msra.mxu0 %v801
      %852 = vmatprep.subr.mxu0 %v761
      %853 = vmatpush1.msra.mxu0 %v760
      %854 = vmatprep.subr.mxu0 %v812
      %855 = vmatpush1.msra.mxu0 %v811
      %856 = vmatprep.subr.mxu0 %v822
      %857 = vmatpush1.msra.mxu0 %v821
      %858 = vmatprep.subr.mxu0 %v830
      %859 = vmatpush1.msra.mxu0 %v827
      %860 = vmatprep.subr.mxu0 %v840
      %861 = vmatpush1.msra.mxu0 %v839
      %862 = vmatprep.subr.mxu0 0.0
      %863 = vmatpush1.msra.mxu0 0.0
      %864 = vmatprep.subr.mxu0 0.0
      %865 = vmatpush1.msra.mxu0 0.0
      %866 = vmatprep.subr.mxu0 0.0
      %867 = vmatpush1.msra.mxu0 0.0
      %868 = vmatprep.subr.mxu0 0.0
      %869 = vmatpush1.msra.mxu0 0.0
      %870 = vmatprep.subr.mxu0 0.0
      %871 = vmatpush1.msra.mxu0 0.0
      %872 = vmatprep.subr.mxu0 0.0
      %873 = vmatpush1.msra.mxu0 0.0
      %874 = vmatprep.subr.mxu0 0.0
      %875 = vmatpush1.msra.mxu0 0.0
      %876 = vmatprep.subr.mxu0 0.0
      %877 = vmatpush1.msra.mxu0 0.0
      %878 = vmatprep.subr.mxu0 0.0
      %879 = vmatpush1.msra.mxu0 0.0
      %880 = vmatprep.subr.mxu0 0.0
      %881 = vmatpush1.msra.mxu0 0.0
      %882 = vmatprep.subr.mxu0 0.0
      %883 = vmatpush1.msra.mxu0 0.0
      %884 = vmatprep.subr.mxu0 0.0
      %885 = vmatpush1.msra.mxu0 0.0
      %886 = vmatprep.subr.mxu0 0.0
      %887 = vmatpush1.msra.mxu0 0.0
      %888 = vmatprep.subr.mxu0 0.0
      %889 = vmatpush1.msra.mxu0 0.0
      %890 = vmatprep.subr.mxu0 0.0
      %891 = vmatpush1.msra.mxu0 0.0
      %892 = vmatprep.subr.mxu0 0.0
      %893 = vmatpush1.msra.mxu0 0.0
      %894 = vmatprep.subr.mxu0 0.0
      %895 = vmatpush1.msra.mxu0 0.0
      %896 = vmatprep.subr.mxu0 0.0
      %897 = vmatpush1.msra.mxu0 0.0
      %898 = vmatprep.subr.mxu0 0.0
      %899 = vmatpush1.msra.mxu0 0.0
      %900 = vmatprep.subr.mxu0 0.0
      %901 = vmatpush1.msra.mxu0 0.0
      %902 = vmatprep.subr.mxu0 0.0
      %903 = vmatpush1.msra.mxu0 0.0
      %904 = vmatprep.subr.mxu0 0.0
      %905 = vmatpush1.msra.mxu0 0.0
      %906 = vmatprep.subr.mxu0 0.0
      %907 = vmatpush1.msra.mxu0 0.0
      %908 = vmatprep.mubr.f32.mxu0 0.0
      %909 = vmatmul.mubr.f32.gmra.mrb[0].mxu0 %v842
      %v910 = vpop.f32.mrb[0].mxu0
      %v911 = vadd.f32 0.0, %v910
      %v912 = vpop.f32.mrb[0].mxu0
      %v913 = vadd.f32 0.0, %v912
      %914 = vdwg.mxu0
      %v915 = vadd.f32 %v572, %v746
      %v916 = vadd.f32 %v574, %v748
      %v917 = vadd.f32 %v915, %v911
      %v918 = vadd.f32 %v916, %v913
      %v919 = vld [vmem:[%s8] sm:$0xf]
      %921 = vset.pattern.permute.xlu0 0
      %922 = vperm.xlu0 %921, %v919
      %v923 = vpop.permute.xlu0 %922
      %v925 = vadd.f32 %v917, %v923
      %v926 = vadd.f32 %v918, %v923
      %v927 = vadd.f32 %v925, %v333
      %v928 = vadd.f32 %v926, %v340
      %v931 = vcombine.low %v927, %v928
      %933 = vst [vmem:[%s332] sm:$0xff] %v931
      %p934 = scmp.lt.s32.totalorder %s20, 1
      %s935 = scalar_select %p934, %s20, 1
      %s936 = smul.addr %s935, 2
      %s937 = smul.addr %s936, 4
      %s938 = scalar_lea.vmem %s9, %s937
      // Predicated region
      $region57: #{rdb_forward.1} parent=55 // pred_check
        %p939 = pneg %p232
      $region58: #{rdb_forward.1} parent=55 // pred_check_branch
        %941 = sbr.rel (%p939) target = $region60
      $region59: #{rdb_forward.1} parent=55 // pred_region
        _
      $region60: #{rdb_forward.1} parent=55 // pred_fallthru
        _
    $region56: #{rdb_forward.1} parent=5 // pred_fallthru
      _
    %p942 = scmp.le.s32.totalorder 2, %s15
    // Predicated region
    $region61: #{rdb_forward.1} parent=5 // pred_check
      %p943 = pneg %p942
    $region62: #{rdb_forward.1} parent=5 // pred_check_branch
      %945 = sbr.rel (%p943) target = $region64
    $region63: #{rdb_forward.1} parent=5 // pred_region
      %s946 = ssub.s32 %s15, 2
      // Predicated region
      $region65: #{rdb_forward.1} parent=63 // pred_check
        %p947 = pneg %p238
      $region66: #{rdb_forward.1} parent=63 // pred_check_branch
        %949 = sbr.rel (%p947) target = $region68
      $region67: #{rdb_forward.1} parent=63 // pred_region
        %p950 = scmp.lt.s32.totalorder %s21, 1
        %s951 = scalar_select %p950, %s21, 1
        %s952 = smul.addr %s951, 2
        %s953 = smul.addr %s952, 4
        %s954 = scalar_lea.vmem %s9, %s953
      $region68: #{rdb_forward.1} parent=63 // pred_fallthru
        _
    $region64: #{rdb_forward.1} parent=5 // pred_fallthru
      _
  $region6: #{rdb_forward.1} parent=0 // loop_footer
    %s19 = sadd.s32 1, %s15
  $region7: #{rdb_forward.1} parent=0 // loop_footer_branch
    %14 = sbr.rel target = $region3
  $region8: #{rdb_forward.1} parent=0 // loop_exit
    _

</llo_original>
